<compile_context>
chip_gen: v5e
topology: v5e:2x2
jax: 0.10.0
libtpu: 0.0.40
codegen_flags: <defaults>
</compile_context>

<pallas_src>
import jax
import jax.numpy as jnp
from jax.experimental import pallas as pl
from jax.experimental.pallas import tpu as pltpu


def _cdiv(a: int, b: int) -> int:
    return (a + b - 1) // b


def _round_up(x: int, m: int) -> int:
    return ((x + m - 1) // m) * m


# ---------------------------------------------------------------------------
# Kernel 1 (single launch): per-row scores for BOTH node sets.
#   s0[r] = sum_c output[r, c]      * w[0, c]        (first half of the weight)
#   s1[r] = sum_c Line_output[r, c] * w[0, C + c]    (second half)
# VPU broadcast-multiply + XLU lane reduction; no MXU (a 1-output-column
# matvec would waste 127/255 MXU columns).
# ---------------------------------------------------------------------------
def _pair_score_kernel(x0_ref, x1_ref, w0_ref, w1_ref, s0_ref, s1_ref):
    # Native-dtype loads; upcast to f32 in-register (halves HBM read bytes
    # when the features are bf16).
    s0_ref[...] = jnp.sum(x0_ref[...].astype(jnp.float32) * w0_ref[...],
                          axis=-1, keepdims=True)
    s1_ref[...] = jnp.sum(x1_ref[...].astype(jnp.float32) * w1_ref[...],
                          axis=-1, keepdims=True)


def _pair_row_scores(x0, x1, w0, w1, row_tile=256):
    """Fused per-row scores for both node sets in ONE pallas_call.

    x0: [R0, C], x1: [R1, C] (native dtype); w0, w1: [1, C] float32.
    Returns (s0 [R0] f32, s1 [R1] f32).
    """
    R0, C = x0.shape
    R1, _ = x1.shape

    # Block rows: full array if small (allowed even when not a multiple of 8),
    # otherwise a multiple-of-8 tile with a partial tail block.
    br0 = R0 if R0 <= row_tile else row_tile
    br1 = R1 if R1 <= row_tile else row_tile
    nb0 = _cdiv(R0, br0)
    nb1 = _cdiv(R1, br1)
    nb = max(nb0, nb1)

    s0, s1 = pl.pallas_call(
        _pair_score_kernel,
        out_shape=(jax.ShapeDtypeStruct((R0, 1), jnp.float32),
                   jax.ShapeDtypeStruct((R1, 1), jnp.float32)),
        grid=(nb,),
        in_specs=[
            pl.BlockSpec((br0, C), lambda i: (jnp.minimum(i, nb0 - 1), 0)),
            pl.BlockSpec((br1, C), lambda i: (jnp.minimum(i, nb1 - 1), 0)),
            pl.BlockSpec((1, C), lambda i: (0, 0)),   # weight halves stay resident
            pl.BlockSpec((1, C), lambda i: (0, 0)),
        ],
        out_specs=(
            pl.BlockSpec((br0, 1), lambda i: (jnp.minimum(i, nb0 - 1), 0)),
            pl.BlockSpec((br1, 1), lambda i: (jnp.minimum(i, nb1 - 1), 0)),
        ),
        # The clamped index maps revisit the final block of the shorter operand
        # (idempotent rewrite of identical data), so this axis must be
        # "arbitrary", not "parallel".
        compiler_params=pltpu.CompilerParams(
            dimension_semantics=("arbitrary",)),
    )(x0, x1, w0, w1)
    return s0[:, 0], s1[:, 0]


# ---------------------------------------------------------------------------
# Kernel 2 (single launch): lane/sublane-dense combine
#   ar[e] = sigmoid(s0[e] + s1[e] + b)
# Inputs are pre-gathered into a [n_rows, 128] layout so every vreg is a full
# (8,128) tile; bias comes from SMEM on the scalar path; sigmoid runs on the
# EUP (its own VLIW slot).
# ---------------------------------------------------------------------------
def _ar_combine_kernel(s0_ref, s1_ref, b_ref, o_ref):
    o_ref[...] = jax.nn.sigmoid(s0_ref[...] + s1_ref[...] + b_ref[0])


def _combine_sigmoid_2d(s0_2d, s1_2d, b):
    """s0_2d, s1_2d: [n_rows, 128] f32; b: [1] f32 -> [n_rows, 128] f32."""
    n_rows = s0_2d.shape[0]
    if n_rows <= 8:
        tile_rows = n_rows                       # full-dim block (tiny problem)
    else:
        # Large (8,128)-dense tiles (<=256x128 f32 = 128 KiB/operand), but keep
        # >=2 grid steps so v7x's second TensorCore gets work on the
        # "parallel" axis.  On v5e/v6e (1 TC) this costs nothing.
        tile_rows = min(256, _round_up(_cdiv(n_rows, 2), 8))
    grid = (_cdiv(n_rows, tile_rows),)

    return pl.pallas_call(
        _ar_combine_kernel,
        out_shape=jax.ShapeDtypeStruct((n_rows, 128), jnp.float32),
        grid=grid,
        in_specs=[pl.BlockSpec((tile_rows, 128), lambda i: (i, 0)),
                  pl.BlockSpec((tile_rows, 128), lambda i: (i, 0)),
                  pl.BlockSpec(memory_space=pltpu.MemorySpace.SMEM)],
        out_specs=pl.BlockSpec((tile_rows, 128), lambda i: (i, 0)),
        compiler_params=pltpu.CompilerParams(
            dimension_semantics=("parallel",)),
    )(s0_2d, s1_2d, b)


# ---------------------------------------------------------------------------
# AR coefficient path — split-score rewrite, math-equivalent to
#   sigmoid(cat(output[i0], Line_output[i1]) @ W.T + b)
# so the kernels touch O((N_nodes + M) * C + E) data instead of a materialized
# [E, 2C] gather/concat buffer.
# ---------------------------------------------------------------------------
def ar_coefficients(params, Line_output, output, H_edge_index):
    w = params["w"].astype(jnp.float32)   # [1, 2C] (PyTorch nn.Linear weight layout)
    b = params["b"].astype(jnp.float32)   # [1]
    C = output.shape[1]
    E = H_edge_index.shape[1]
    if E == 0:                            # degenerate graph: no edges
        return jnp.zeros((0,), jnp.float32)

    # Launch 1: per-row scores for both node sets (fused).
    s_out, s_line = _pair_row_scores(output, Line_output, w[:, :C], w[:, C:])

    # Length-E scalar gathers stay in XLA, but land directly in the
    # (8,128)-dense 2-D layout the combine kernel consumes.  Only the tiny
    # int32 index arrays get padded (pad index 0 is always valid; padded lanes
    # are sliced off below).  NOTE: jnp.take clamps out-of-range indices where
    # the PyTorch reference would raise; indices are assumed valid.
    n_rows = _cdiv(E, 128)
    pad = n_rows * 128 - E
    idx0 = jnp.pad(H_edge_index[0].astype(jnp.int32), (0, pad)).reshape(n_rows, 128)
    idx1 = jnp.pad(H_edge_index[1].astype(jnp.int32), (0, pad)).reshape(n_rows, 128)
    s0_2d = jnp.take(s_out, idx0, axis=0)     # [n_rows, 128]
    s1_2d = jnp.take(s_line, idx1, axis=0)    # [n_rows, 128]

    # TODO(synk): fold this gather into the combine kernel (score tables
    # resident in VMEM + in-kernel dynamic gather) to remove the ~16*E-byte
    # HBM round trip of s0_2d/s1_2d; kept in XLA here for lowering robustness.

    # Launch 2: lane/sublane-dense add + sigmoid.
    ar = _combine_sigmoid_2d(s0_2d, s1_2d, b)
    return ar.reshape(-1)[:E]


# ---------------------------------------------------------------------------
# Forward pass.  The reference output is A @ Line_output with A == zeros, so it
# is the all-zeros [N, C] matrix; emit it directly (no HBM zero-fill, no DMAs,
# no MXU pass).  Dtype follows the f32-zeros @ Line_output promotion rule.
# ---------------------------------------------------------------------------
def cross_level_forward(params, Line_output, output, H_edge_index, H,
                        *, compute_ar_coff=False):
    out_dtype = jnp.promote_types(jnp.float32, Line_output.dtype)
    out = jnp.zeros((H.shape[0], Line_output.shape[1]), dtype=out_dtype)
    if compute_ar_coff:
        # The reference forward computes-and-discards AR_coff; it is exposed
        # here only for consumers (e.g. a training variant) that need it.
        ar_coff = ar_coefficients(params, Line_output, output, H_edge_index)
        return out, ar_coff
    return out


if __name__ == "__main__":
    key = jax.random.PRNGKey(0)

    C = 32        # in_channels
    M = 16        # rows of Line_output == cols of H
    N_nodes = 8   # rows of `output`
    N = 8         # H.shape[0]
    E = 12        # number of edge pairs

    k1, k2, k3, k4, k5, k6 = jax.random.split(key, 6)
    Line_output = jax.random.normal(k1, (M, C), dtype=jnp.float32)
    output = jax.random.normal(k2, (N_nodes, C), dtype=jnp.float32)
    H = jax.random.normal(k3, (N, M), dtype=jnp.float32)
    idx0 = jax.random.randint(k4, (E,), 0, N_nodes)
    idx1 = jax.random.randint(k5, (E,), 0, M)
    H_edge_index = jnp.stack([idx0, idx1], axis=0)

    kw, kb = jax.random.split(k6)
    params = {
        "w": jax.random.normal(kw, (1, 2 * C), dtype=jnp.float32) * 0.1,
        "b": jax.random.normal(kb, (1,), dtype=jnp.float32) * 0.1,
    }

    out, ar_coff = cross_level_forward(
        params, Line_output, output, H_edge_index, H, compute_ar_coff=True)
    out, ar_coff = jax.block_until_ready((out, ar_coff))

    # Module output semantics: zeros(N, C) == (zeros(N, M) @ Line_output).
    assert out.shape == (N, C), out.shape
    assert out.dtype == jnp.float32, out.dtype
    assert bool(jnp.all(out == 0.0))

    # Verify the Pallas AR path against the pure-JAX reference of the module.
    pairs = jnp.concatenate((output[idx0, :], Line_output[idx1, :]), axis=1)
    ref_coff = jax.nn.sigmoid(pairs @ params["w"].T + params["b"]).squeeze()
    assert ar_coff.shape == (E,), ar_coff.shape
    assert bool(jnp.allclose(ar_coff, ref_coff, atol=1e-5, rtol=1e-5))

    print("KERNEL_OK")
</pallas_src>

<mosaic_0001>
module attributes {stable_mosaic.version = 11 : i64} {
  func.func @_pair_score_kernel(%arg0: i32, %arg1: memref<8x32xf32, #tpu.memory_space<vmem>>, %arg2: memref<16x32xf32, #tpu.memory_space<vmem>>, %arg3: memref<1x32xf32, #tpu.memory_space<vmem>>, %arg4: memref<1x32xf32, #tpu.memory_space<vmem>>, %arg5: memref<8x1xf32, #tpu.memory_space<vmem>>, %arg6: memref<16x1xf32, #tpu.memory_space<vmem>>) attributes {dimension_semantics = [#tpu.dimension_semantics<arbitrary>], iteration_bounds = array<i64: 1>, scalar_prefetch = 0 : i64, scratch_operands = 0 : i64, tpu.core_type = #tpu.core_type<tc>, window_params = [{transform_indices = @transform_0, window_bounds = array<i64: 8, 32>}, {transform_indices = @transform_1, window_bounds = array<i64: 16, 32>}, {pipeline_mode = #tpu.pipeline_mode<synchronous>, transform_indices = @transform_2, window_bounds = array<i64: 1, 32>}, {pipeline_mode = #tpu.pipeline_mode<synchronous>, transform_indices = @transform_3, window_bounds = array<i64: 1, 32>}, {transform_indices = @transform_4, window_bounds = array<i64: 8, 1>}, {transform_indices = @transform_5, window_bounds = array<i64: 16, 1>}]} {
    %c0 = arith.constant 0 : index
    %c0_0 = arith.constant 0 : index
    %0 = vector.load %arg1[%c0, %c0_0] : memref<8x32xf32, #tpu.memory_space<vmem>>, vector<8x32xf32>
    %c0_1 = arith.constant 0 : index
    %c0_2 = arith.constant 0 : index
    %1 = vector.load %arg3[%c0_1, %c0_2] : memref<1x32xf32, #tpu.memory_space<vmem>>, vector<1x32xf32>
    %2 = vector.broadcast %1 : vector<1x32xf32> to vector<8x32xf32>
    %3 = arith.mulf %0, %2 : vector<8x32xf32>
    %cst = arith.constant dense<0.000000e+00> : vector<8xf32>
    %4 = vector.multi_reduction <add>, %3, %cst [1] : vector<8x32xf32> to vector<8xf32>
    %5 = vector.shape_cast %4 : vector<8xf32> to vector<8x1xf32>
    %c0_3 = arith.constant 0 : index
    %c0_4 = arith.constant 0 : index
    %6 = vector.load %arg5[%c0_3, %c0_4] : memref<8x1xf32, #tpu.memory_space<vmem>>, vector<8x1xf32>
    tpu.vector_store %arg5[%c0_3, %c0_4], %5 {strides = array<i32>} : memref<8x1xf32, #tpu.memory_space<vmem>>, vector<8x1xf32>,
    %c0_5 = arith.constant 0 : index
    %c0_6 = arith.constant 0 : index
    %7 = vector.load %arg2[%c0_5, %c0_6] : memref<16x32xf32, #tpu.memory_space<vmem>>, vector<16x32xf32>
    %c0_7 = arith.constant 0 : index
    %c0_8 = arith.constant 0 : index
    %8 = vector.load %arg4[%c0_7, %c0_8] : memref<1x32xf32, #tpu.memory_space<vmem>>, vector<1x32xf32>
    %9 = vector.broadcast %8 : vector<1x32xf32> to vector<16x32xf32>
    %10 = arith.mulf %7, %9 : vector<16x32xf32>
    %cst_9 = arith.constant dense<0.000000e+00> : vector<16xf32>
    %11 = vector.multi_reduction <add>, %10, %cst_9 [1] : vector<16x32xf32> to vector<16xf32>
    %12 = vector.shape_cast %11 : vector<16xf32> to vector<16x1xf32>
    %c0_10 = arith.constant 0 : index
    %c0_11 = arith.constant 0 : index
    %13 = vector.load %arg6[%c0_10, %c0_11] : memref<16x1xf32, #tpu.memory_space<vmem>>, vector<16x1xf32>
    tpu.vector_store %arg6[%c0_10, %c0_11], %12 {strides = array<i32>} : memref<16x1xf32, #tpu.memory_space<vmem>>, vector<16x1xf32>,
    return
  }
  func.func @transform_0(%arg0: i32) -> (i32, i32) {
    %c0_i32 = arith.constant 0 : i32
    %0 = arith.minsi %arg0, %c0_i32 : i32
    %c0_i32_0 = arith.constant 0 : i32
    %c0_i32_1 = arith.constant 0 : i32
    return %0, %c0_i32_0 : i32, i32
  }
  func.func @transform_1(%arg0: i32) -> (i32, i32) {
    %c0_i32 = arith.constant 0 : i32
    %0 = arith.minsi %arg0, %c0_i32 : i32
    %c0_i32_0 = arith.constant 0 : i32
    %c0_i32_1 = arith.constant 0 : i32
    return %0, %c0_i32_0 : i32, i32
  }
  func.func @transform_2(%arg0: i32) -> (i32, i32) {
    %c0_i32 = arith.constant 0 : i32
    %c0_i32_0 = arith.constant 0 : i32
    %c0_i32_1 = arith.constant 0 : i32
    return %c0_i32, %c0_i32_0 : i32, i32
  }
  func.func @transform_3(%arg0: i32) -> (i32, i32) {
    %c0_i32 = arith.constant 0 : i32
    %c0_i32_0 = arith.constant 0 : i32
    %c0_i32_1 = arith.constant 0 : i32
    return %c0_i32, %c0_i32_0 : i32, i32
  }
  func.func @transform_4(%arg0: i32) -> (i32, i32) {
    %c0_i32 = arith.constant 0 : i32
    %0 = arith.minsi %arg0, %c0_i32 : i32
    %c0_i32_0 = arith.constant 0 : i32
    %c0_i32_1 = arith.constant 0 : i32
    return %0, %c0_i32_0 : i32, i32
  }
  func.func @transform_5(%arg0: i32) -> (i32, i32) {
    %c0_i32 = arith.constant 0 : i32
    %0 = arith.minsi %arg0, %c0_i32 : i32
    %c0_i32_0 = arith.constant 0 : i32
    %c0_i32_1 = arith.constant 0 : i32
    return %0, %c0_i32_0 : i32, i32
  }
}

</mosaic_0001>

<llo_original>
// kernel: tpu_custom_call.1
$region0: #{tpu_custom_call.1}
  #allocation0 [shape = 'u32[]', space=smem, size = 0x4, offset = 0x4, fixed_abs, tag = 'smem constant byte address 0x4 - core index']
  #allocation1 [shape = 'u32[72,128]{1,0:T(1,128)}', space=vmem, size = 0x9000, scoped, tag = 'internal scratch']
  %s0 = inlined_call_operand.hbm [shape: f32[8,32], index: 0, kind: input, shape index: {}]
  %s1 = inlined_call_operand.hbm [shape: f32[16,32], index: 1, kind: input, shape index: {}]
  %s2 = inlined_call_operand.vmem [shape: f32[1,32], index: 2, kind: input, shape index: {}]
  %s3 = inlined_call_operand.vmem [shape: f32[1,32], index: 3, kind: input, shape index: {}]
  %s4 = inlined_call_operand.vmem [shape: f32[8,1], index: 4, kind: output, shape index: {0}]
  %s5 = inlined_call_operand.vmem [shape: f32[16,1], index: 5, kind: output, shape index: {1}]
  %6 = xla_tuple %s4, %s5
  %s7 = sld [smem:[#allocation0]]
  $region42: #{tpu_custom_call.1} parent=0
    _
  %s9 = ssub.s32 1, %s7
  %s10 = scalar_select 0, %s9, %s7
  $region1: #{tpu_custom_call.1} parent=0
    #allocation2 [shape = 'u8[4096]{0}', space=vmem, size = 0x1000, scoped, tag = 'input window, operand 0, single buffered']
    #allocation3 [shape = 's32[1]{0}', space=sflag, size = 0x4, scoped, tag = 'scoped memory for tpu_custom_call.1']
    #allocation4 [shape = 'u8[8192]{0}', space=vmem, size = 0x2000, scoped, tag = 'input window, operand 1, single buffered']
    #allocation5 [shape = 's32[1]{0}', space=sflag, size = 0x4, scoped, tag = 'scoped memory for tpu_custom_call.1']
    %11 = vsyncpa [#allocation3], 0
    %12 = vsyncpa [#allocation5], 0
    // Predicated region
    $region2: #{tpu_custom_call.1} parent=1 // pred_check
      _
    $region3: #{tpu_custom_call.1} parent=1 // pred_check_branch
      %14 = sbr.rel (0) target = $region5
    $region4: #{tpu_custom_call.1} parent=1 // pred_region
      %16 = vsyncadd [#allocation3], 0
      %s18 = sshll.u32 %s0, 4
      %s19 = int_to_ptr.hbm [resolvable:$true] %s18
      %s20 = sshll.u32 [#allocation2], 4
      %s21 = int_to_ptr.vmem [resolvable:$true] %s20
      %23 = dma.hbm_to_vmem [thread:$0]  %s19, 128, %s21, [#allocation3]
    $region5: #{tpu_custom_call.1} parent=1 // pred_fallthru
      _
    // Predicated region
    $region6: #{tpu_custom_call.1} parent=1 // pred_check
      _
    $region7: #{tpu_custom_call.1} parent=1 // pred_check_branch
      %25 = sbr.rel (0) target = $region9
    $region8: #{tpu_custom_call.1} parent=1 // pred_region
      %27 = vsyncadd [#allocation5], 0
      %s28 = sshll.u32 %s1, 4
      %s29 = int_to_ptr.hbm [resolvable:$true] %s28
      %s30 = sshll.u32 [#allocation4], 4
      %s31 = int_to_ptr.vmem [resolvable:$true] %s30
      %36 = dma.hbm_to_vmem [thread:$0]  %s29, 256, %s31, [#allocation5], 128, 128, 8
    $region9: #{tpu_custom_call.1} parent=1 // pred_fallthru
      _
    // Predicated region
    $region10: #{tpu_custom_call.1} parent=1 // pred_check
      _
    $region11: #{tpu_custom_call.1} parent=1 // pred_check_branch
      %38 = sbr.rel (0) target = $region13
    $region12: #{tpu_custom_call.1} parent=1 // pred_region
      _
    $region13: #{tpu_custom_call.1} parent=1 // pred_fallthru
      _
    // Predicated region
    $region14: #{tpu_custom_call.1} parent=1 // pred_check
      _
    $region15: #{tpu_custom_call.1} parent=1 // pred_check_branch
      %40 = sbr.rel (0) target = $region17
    $region16: #{tpu_custom_call.1} parent=1 // pred_region
      _
    $region17: #{tpu_custom_call.1} parent=1 // pred_fallthru
      _
    // Predicated region
    $region18: #{tpu_custom_call.1} parent=1 // pred_check
      _
    $region19: #{tpu_custom_call.1} parent=1 // pred_check_branch
      %42 = sbr.rel (0) target = $region21
    $region20: #{tpu_custom_call.1} parent=1 // pred_region
      %44 = dma.done [#allocation3], 128
    $region21: #{tpu_custom_call.1} parent=1 // pred_fallthru
      _
    // Predicated region
    $region22: #{tpu_custom_call.1} parent=1 // pred_check
      _
    $region23: #{tpu_custom_call.1} parent=1 // pred_check_branch
      %46 = sbr.rel (0) target = $region25
    $region24: #{tpu_custom_call.1} parent=1 // pred_region
      %48 = dma.done [#allocation5], 256
    $region25: #{tpu_custom_call.1} parent=1 // pred_fallthru
      _
    %v49 = vld [vmem:[#allocation2] sm:$0xff]
    %v50 = vld [vmem:[%s2] sm:$0x1]
    %v52 = vperm.slane %v50, 0
    %v54 = vmul.f32 %v49, %v52
    %vm55 = vcmask 261120
    %v56 = vsel %vm55, %v54, 0.0
    %57 = vadd.xlane.f32.xlu0 %v56
    %v58 = vpop.xlane.xlu0 %57
    %vm59 = vcmask 7168
    %60 = vst.msk [vmem:[%s4] sm:$0xff] %vm59, %v58
    %v61 = vld [vmem:[#allocation4] sm:$0xff]
    %v62 = vld [vmem:[#allocation4 + $0x8] sm:$0xff]
    %v63 = vld [vmem:[%s3] sm:$0x1]
    %v65 = vperm.slane %v63, 0
    %v67 = vmul.f32 %v61, %v65
    %v68 = vmul.f32 %v62, %v65
    %v69 = vsel %vm55, %v67, 0.0
    %70 = vadd.xlane.f32.xlu0 %v69
    %v71 = vpop.xlane.xlu0 %70
    %v72 = vsel %vm55, %v68, 0.0
    %73 = vadd.xlane.f32.xlu0 %v72
    %v74 = vpop.xlane.xlu0 %73
    %75 = vst.msk [vmem:[%s5] sm:$0xff] %vm59, %v71
    %76 = vst.msk [vmem:[%s5 + $0x8] sm:$0xff] %vm59, %v74
    // Predicated region
    $region26: #{tpu_custom_call.1} parent=1 // pred_check
      _
    $region27: #{tpu_custom_call.1} parent=1 // pred_check_branch
      %78 = sbr.rel (0) target = $region29
    $region28: #{tpu_custom_call.1} parent=1 // pred_region
      _
    $region29: #{tpu_custom_call.1} parent=1 // pred_fallthru
      _
    // Predicated region
    $region30: #{tpu_custom_call.1} parent=1 // pred_check
      _
    $region31: #{tpu_custom_call.1} parent=1 // pred_check_branch
      %80 = sbr.rel (0) target = $region33
    $region32: #{tpu_custom_call.1} parent=1 // pred_region
      _
    $region33: #{tpu_custom_call.1} parent=1 // pred_fallthru
      _
    // Predicated region
    $region34: #{tpu_custom_call.1} parent=1 // pred_check
      _
    $region35: #{tpu_custom_call.1} parent=1 // pred_check_branch
      %82 = sbr.rel (0) target = $region37
    $region36: #{tpu_custom_call.1} parent=1 // pred_region
      _
    $region37: #{tpu_custom_call.1} parent=1 // pred_fallthru
      _
    // Predicated region
    $region38: #{tpu_custom_call.1} parent=1 // pred_check
      _
    $region39: #{tpu_custom_call.1} parent=1 // pred_check_branch
      %84 = sbr.rel (0) target = $region41
    $region40: #{tpu_custom_call.1} parent=1 // pred_region
      _
    $region41: #{tpu_custom_call.1} parent=1 // pred_fallthru
      _
    %85 = vsyncpa [#allocation3], 1
    %86 = vsyncpa [#allocation5], 1

</llo_original>
